<compile_context>
chip_gen: v6e
topology: v6e:2x2x1
jax: 0.10.0
libtpu: 0.0.40
codegen_flags: <defaults>
</compile_context>

<pallas_src>
import functools

import jax
import jax.numpy as jnp
from jax import lax
from jax.experimental import pallas as pl
from jax.experimental.pallas import tpu as pltpu


def _round_up(x: int, m: int) -> int:
    return ((x + m - 1) // m) * m


def _device_kind() -> str:
    try:
        return jax.devices()[0].device_kind.lower()
    except Exception:
        return ""


def _grad_loss_kernel(x_ref, out_ref, acc_h_ref, acc_w_ref, *,
                      H: int, W: int, penalty_l2: bool):
    k = pl.program_id(1)  # accumulation ("arbitrary") axis

    @pl.when(k == 0)
    def _init():
        acc_h_ref[...] = jnp.zeros_like(acc_h_ref)
        acc_w_ref[...] = jnp.zeros_like(acc_w_ref)

    x = x_ref[...]                       # (B, HW), lane-dense, input dtype
    B, HW = x.shape
    G = B // 8

    if H > 1:
        # x[(p + W) % HW] at lane p; wrapped (last-row) lanes masked at finalize.
        xh = pltpu.roll(x, HW - W, 1)    # XLU rotate, np.roll semantics
        dh = jnp.abs(xh - x)
        if penalty_l2:
            dh = dh * dh
        dh32 = dh.astype(jnp.float32)
        # Fold the batch axis down to one sublane group with pure VPU adds.
        folded_h = dh32 if G == 1 else jnp.sum(dh32.reshape(G, 8, HW), axis=0)
        acc_h_ref[...] += folded_h

    if W > 1:
        xw = pltpu.roll(x, HW - 1, 1)    # x[(p + 1) % HW] at lane p
        dw = jnp.abs(xw - x)
        if penalty_l2:
            dw = dw * dw
        dw32 = dw.astype(jnp.float32)
        folded_w = dw32 if G == 1 else jnp.sum(dw32.reshape(G, 8, HW), axis=0)
        acc_w_ref[...] += folded_w

    @pl.when(k == pl.num_programs(1) - 1)
    def _finalize():
        # Masks applied once here (only 8*HW elements), not per grid step.
        col = lax.broadcasted_iota(jnp.int32, acc_h_ref.shape, 1)
        if H > 1:
            mask_h = (col < (H - 1) * W).astype(jnp.float32)
            out_ref[0, 0] = jnp.sum(acc_h_ref[...] * mask_h)
        else:
            out_ref[0, 0] = jnp.float32(0.0)
        if W > 1:
            mask_w = (col % W != W - 1).astype(jnp.float32)
            out_ref[0, 1] = jnp.sum(acc_w_ref[...] * mask_w)
        else:
            out_ref[0, 1] = jnp.float32(0.0)


def gradient_loss(x: jax.Array, penalty: str = "l1") -> jax.Array:
    """Pallas equivalent of gradientLoss.forward(input) for NCHW `x`."""
    N, C, H, W = x.shape
    NC, HW = N * C, H * W
    xf = x.reshape(NC, HW)
    itemsize = jnp.dtype(x.dtype).itemsize

    kind = _device_kind()
    is_v7 = ("v7" in kind) or ("7x" in kind)
    n_cores = 2 if (is_v7 or "v4" in kind) else 1   # TCs addressable per device

    # ~4 MiB input blocks (sized as-if f32): amortizes the ~0.35us/step pipeline
    # overhead while double-buffered input + a few block-sized f32 temporaries
    # stay inside v7x's 64 MiB VMEM (and far inside v5e/v6e's 128 MiB).
    target_block_bytes = 4 * 1024 * 1024
    slab_f32_bytes = max(HW * 4, 1)
    B = max(8, (target_block_bytes // slab_f32_bytes) // 8 * 8)  # multiple of 8
    B = min(B, _round_up(NC, 8))
    # TODO(synk): for very large single slabs (H*W*4 bytes >> 4 MiB) tile H
    # inside the grid with a one-row halo instead of loading whole slabs.

    nb = _round_up(NC, B) // B          # number of (B, HW) blocks
    P = n_cores if nb >= n_cores else 1  # megacore split only where it exists
    K = -(-nb // P)                      # blocks per core (ceil)
    NC_pad = P * K * B
    if NC_pad != NC:
        # Zero padding is exact: all diffs inside an all-zero slab are 0.
        xf = jnp.pad(xf, ((0, NC_pad - NC), (0, 0)))

    kernel = functools.partial(
        _grad_loss_kernel, H=H, W=W, penalty_l2=(penalty == "l2"))

    partials = pl.pallas_call(
        kernel,
        out_shape=jax.ShapeDtypeStruct((P, 2), jnp.float32),
        grid=(P, K),
        in_specs=[
            pl.BlockSpec((B, HW), lambda p, k: (p * K + k, 0)),
        ],
        out_specs=pl.BlockSpec((1, 2), lambda p, k: (p, 0),
                               memory_space=pltpu.SMEM),
        scratch_shapes=[
            pltpu.VMEM((8, HW), jnp.float32),   # folded dH accumulator
            pltpu.VMEM((8, HW), jnp.float32),   # folded dW accumulator
        ],
        compiler_params=pltpu.CompilerParams(
            dimension_semantics=("parallel", "arbitrary"),
            vmem_limit_bytes=(48 if is_v7 else 64) * 1024 * 1024,
        ),
        cost_estimate=pl.CostEstimate(
            flops=6 * NC * HW,
            transcendentals=0,
            bytes_accessed=NC_pad * HW * itemsize,
        ),
    )(xf)

    dh_sum = jnp.sum(partials[:, 0])
    dw_sum = jnp.sum(partials[:, 1])

    n_dh = NC * (H - 1) * W   # number of elements in dH
    n_dw = NC * H * (W - 1)   # number of elements in dW
    # Degenerate H==1 / W==1 gives an empty diff (NaN mean in PyTorch too).
    dh_mean = dh_sum / n_dh if n_dh > 0 else jnp.float32(jnp.nan)
    dw_mean = dw_sum / n_dw if n_dw > 0 else jnp.float32(jnp.nan)
    return (dh_mean + dw_mean) * 0.5


def _reference(x, penalty="l1"):
    dH = jnp.abs(x[:, :, 1:, :] - x[:, :, :-1, :])
    dW = jnp.abs(x[:, :, :, 1:] - x[:, :, :, :-1])
    if penalty == "l2":
        dH = dH * dH
        dW = dW * dW
    return (jnp.mean(dH) + jnp.mean(dW)) / 2.0


if __name__ == "__main__":
    key = jax.random.PRNGKey(0)
    x = jax.random.normal(key, (2, 4, 16, 16), dtype=jnp.float32)

    for penalty in ("l1", "l2"):
        out = jax.block_until_ready(gradient_loss(x, penalty=penalty))
        ref = jax.block_until_ready(_reference(x, penalty=penalty))
        assert jnp.allclose(out, ref, rtol=1e-5, atol=1e-6), (
            penalty, float(out), float(ref))

    print("KERNEL_OK")
</pallas_src>

<mosaic_0001>
module attributes {stable_mosaic.version = 11 : i64} {
  func.func @_grad_loss_kernel(%arg0: i32, %arg1: i32, %arg2: memref<8x256xf32, #tpu.memory_space<vmem>>, %arg3: memref<1x2xf32, #tpu.memory_space<smem>>, %arg4: memref<8x256xf32, #tpu.memory_space<vmem>>, %arg5: memref<8x256xf32, #tpu.memory_space<vmem>>) attributes {dimension_semantics = [#tpu.dimension_semantics<parallel>, #tpu.dimension_semantics<arbitrary>], iteration_bounds = array<i64: 1, 1>, scalar_prefetch = 0 : i64, scratch_operands = 2 : i64, tpu.core_type = #tpu.core_type<tc>, window_params = [{transform_indices = @transform_0, window_bounds = array<i64: 8, 256>}, {transform_indices = @transform_1, window_bounds = array<i64: 1, 2>}]} {
    %c0_i32 = arith.constant 0 : i32
    %0 = arith.cmpi eq, %arg1, %c0_i32 : i32
    %1 = arith.extui %0 : i1 to i32
    %c0_i32_0 = arith.constant 0 : i32
    %2 = arith.cmpi ne, %1, %c0_i32_0 : i32
    scf.if %2 {
      %cst = arith.constant 0.000000e+00 : f32
      %19 = vector.broadcast %cst : f32 to vector<8x256xf32>
      %c0_12 = arith.constant 0 : index
      %c0_13 = arith.constant 0 : index
      %20 = vector.load %arg4[%c0_12, %c0_13] : memref<8x256xf32, #tpu.memory_space<vmem>>, vector<8x256xf32>
      tpu.vector_store %arg4[%c0_12, %c0_13], %19 {strides = array<i32>} : memref<8x256xf32, #tpu.memory_space<vmem>>, vector<8x256xf32>,
      %cst_14 = arith.constant 0.000000e+00 : f32
      %21 = vector.broadcast %cst_14 : f32 to vector<8x256xf32>
      %c0_15 = arith.constant 0 : index
      %c0_16 = arith.constant 0 : index
      %22 = vector.load %arg5[%c0_15, %c0_16] : memref<8x256xf32, #tpu.memory_space<vmem>>, vector<8x256xf32>
      tpu.vector_store %arg5[%c0_15, %c0_16], %21 {strides = array<i32>} : memref<8x256xf32, #tpu.memory_space<vmem>>, vector<8x256xf32>,
    } else {
    }
    %c0 = arith.constant 0 : index
    %c0_1 = arith.constant 0 : index
    %3 = vector.load %arg2[%c0, %c0_1] : memref<8x256xf32, #tpu.memory_space<vmem>>, vector<8x256xf32>
    %c240_i32 = arith.constant 240 : i32
    %4 = tpu.dynamic_rotate %3 by %c240_i32 dim 1 : vector<8x256xf32>, i32 -> vector<8x256xf32>
    %5 = arith.subf %4, %3 : vector<8x256xf32>
    %6 = math.absf %5 : vector<8x256xf32>
    %c0_2 = arith.constant 0 : index
    %c0_3 = arith.constant 0 : index
    %7 = vector.load %arg4[%c0_2, %c0_3] : memref<8x256xf32, #tpu.memory_space<vmem>>, vector<8x256xf32>
    %8 = arith.addf %7, %6 : vector<8x256xf32>
    %c0_4 = arith.constant 0 : index
    %c0_5 = arith.constant 0 : index
    %9 = vector.load %arg4[%c0_4, %c0_5] : memref<8x256xf32, #tpu.memory_space<vmem>>, vector<8x256xf32>
    tpu.vector_store %arg4[%c0_4, %c0_5], %8 {strides = array<i32>} : memref<8x256xf32, #tpu.memory_space<vmem>>, vector<8x256xf32>,
    %c255_i32 = arith.constant 255 : i32
    %10 = tpu.dynamic_rotate %3 by %c255_i32 dim 1 : vector<8x256xf32>, i32 -> vector<8x256xf32>
    %11 = arith.subf %10, %3 : vector<8x256xf32>
    %12 = math.absf %11 : vector<8x256xf32>
    %c0_6 = arith.constant 0 : index
    %c0_7 = arith.constant 0 : index
    %13 = vector.load %arg5[%c0_6, %c0_7] : memref<8x256xf32, #tpu.memory_space<vmem>>, vector<8x256xf32>
    %14 = arith.addf %13, %12 : vector<8x256xf32>
    %c0_8 = arith.constant 0 : index
    %c0_9 = arith.constant 0 : index
    %15 = vector.load %arg5[%c0_8, %c0_9] : memref<8x256xf32, #tpu.memory_space<vmem>>, vector<8x256xf32>
    tpu.vector_store %arg5[%c0_8, %c0_9], %14 {strides = array<i32>} : memref<8x256xf32, #tpu.memory_space<vmem>>, vector<8x256xf32>,
    %c0_i32_10 = arith.constant 0 : i32
    %16 = arith.cmpi eq, %arg1, %c0_i32_10 : i32
    %17 = arith.extui %16 : i1 to i32
    %c0_i32_11 = arith.constant 0 : i32
    %18 = arith.cmpi ne, %17, %c0_i32_11 : i32
    scf.if %18 {
      %19 = tpu.iota {dimensions = array<i32: 1>} : vector<8x256xi32>
      %c240_i32_12 = arith.constant 240 : i32
      %20 = vector.broadcast %c240_i32_12 : i32 to vector<8x256xi32>
      %21 = arith.cmpi slt, %19, %20 : vector<8x256xi32>
      %22 = arith.extui %21 : vector<8x256xi1> to vector<8x256xi32>
      %23 = arith.sitofp %22 : vector<8x256xi32> to vector<8x256xf32>
      %c0_13 = arith.constant 0 : index
      %c0_14 = arith.constant 0 : index
      %24 = vector.load %arg4[%c0_13, %c0_14] : memref<8x256xf32, #tpu.memory_space<vmem>>, vector<8x256xf32>
      %25 = arith.mulf %24, %23 : vector<8x256xf32>
      %26 = vector.shape_cast %25 : vector<8x256xf32> to vector<1x8x256xf32>
      %cst = arith.constant dense<0.000000e+00> : vector<1xf32>
      %27 = vector.multi_reduction <add>, %26, %cst [1, 2] : vector<1x8x256xf32> to vector<1xf32>
      %28 = vector.shape_cast %27 : vector<1xf32> to vector<1x1x1xf32>
      %29 = vector.extract %28[0, 0, 0] : f32 from vector<1x1x1xf32>
      %c0_15 = arith.constant 0 : index
      %c0_16 = arith.constant 0 : index
      %30 = memref.load %arg3[%c0_15, %c0_16] : memref<1x2xf32, #tpu.memory_space<smem>>
      memref.store %29, %arg3[%c0_15, %c0_16] : memref<1x2xf32, #tpu.memory_space<smem>>
      %c16_i32 = arith.constant 16 : i32
      %c0_i32_17 = arith.constant 0 : i32
      %31 = arith.cmpi eq, %c16_i32, %c0_i32_17 : i32
      %c1_i32 = arith.constant 1 : i32
      %32 = arith.select %31, %c1_i32, %c16_i32 : i32
      %33 = vector.broadcast %32 : i32 to vector<8x256xi32>
      %34 = arith.remsi %19, %33 : vector<8x256xi32>
      %c0_i32_18 = arith.constant 0 : i32
      %35 = vector.broadcast %c0_i32_18 : i32 to vector<8x256xi32>
      %36 = arith.cmpi ne, %34, %35 : vector<8x256xi32>
      %c0_i32_19 = arith.constant 0 : i32
      %37 = vector.broadcast %c0_i32_19 : i32 to vector<8x256xi32>
      %38 = arith.cmpi slt, %34, %37 : vector<8x256xi32>
      %c0_i32_20 = arith.constant 0 : i32
      %39 = arith.cmpi slt, %32, %c0_i32_20 : i32
      %40 = vector.broadcast %39 : i1 to vector<8x256xi1>
      %41 = vector.broadcast %40 : vector<8x256xi1> to vector<8x256xi1>
      %42 = arith.xori %38, %41 : vector<8x256xi1>
      %43 = arith.andi %42, %36 : vector<8x256xi1>
      %44 = vector.broadcast %32 : i32 to vector<8x256xi32>
      %45 = arith.addi %34, %44 : vector<8x256xi32>
      %46 = arith.select %43, %45, %34 : vector<8x256xi1>, vector<8x256xi32>
      %c15_i32 = arith.constant 15 : i32
      %47 = vector.broadcast %c15_i32 : i32 to vector<8x256xi32>
      %48 = arith.cmpi ne, %46, %47 : vector<8x256xi32>
      %49 = arith.extui %48 : vector<8x256xi1> to vector<8x256xi32>
      %50 = arith.sitofp %49 : vector<8x256xi32> to vector<8x256xf32>
      %c0_21 = arith.constant 0 : index
      %c0_22 = arith.constant 0 : index
      %51 = vector.load %arg5[%c0_21, %c0_22] : memref<8x256xf32, #tpu.memory_space<vmem>>, vector<8x256xf32>
      %52 = arith.mulf %51, %50 : vector<8x256xf32>
      %53 = vector.shape_cast %52 : vector<8x256xf32> to vector<1x8x256xf32>
      %cst_23 = arith.constant dense<0.000000e+00> : vector<1xf32>
      %54 = vector.multi_reduction <add>, %53, %cst_23 [1, 2] : vector<1x8x256xf32> to vector<1xf32>
      %55 = vector.shape_cast %54 : vector<1xf32> to vector<1x1x1xf32>
      %56 = vector.extract %55[0, 0, 0] : f32 from vector<1x1x1xf32>
      %c0_24 = arith.constant 0 : index
      %c1 = arith.constant 1 : index
      %57 = memref.load %arg3[%c0_24, %c1] : memref<1x2xf32, #tpu.memory_space<smem>>
      memref.store %56, %arg3[%c0_24, %c1] : memref<1x2xf32, #tpu.memory_space<smem>>
    } else {
    }
    return
  }
  func.func @transform_0(%arg0: i32, %arg1: i32) -> (i32, i32) {
    %c1_i32 = arith.constant 1 : i32
    %0 = arith.muli %arg0, %c1_i32 : i32
    %1 = arith.addi %0, %arg1 : i32
    %c0_i32 = arith.constant 0 : i32
    %c0_i32_0 = arith.constant 0 : i32
    return %1, %c0_i32 : i32, i32
  }
  func.func @transform_1(%arg0: i32, %arg1: i32) -> (i32, i32) {
    %c0_i32 = arith.constant 0 : i32
    %c0_i32_0 = arith.constant 0 : i32
    return %arg0, %c0_i32 : i32, i32
  }
}

</mosaic_0001>

<llo_original>
// kernel: tpu_custom_call.1
$region0: #{tpu_custom_call.1}
  #allocation0 [shape = 'u32[]', space=smem, size = 0x4, offset = 0x4, fixed_abs, tag = 'smem constant byte address 0x4 - core index']
  #allocation1 [shape = 'u32[144,128]{1,0:T(1,128)}', space=vmem, size = 0x12000, scoped, tag = 'internal scratch']
  #allocation2 [shape = 'f32[8,256]{1,0:T(8,128)}', space=vmem, size = 0x2000, scoped, tag = 'scratch operand']
  #allocation3 [shape = 'f32[8,256]{1,0:T(8,128)}', space=vmem, size = 0x2000, scoped, tag = 'scratch operand']
  %s0 = inlined_call_operand.hbm [shape: f32[8,256], index: 0, kind: input, shape index: {}]
  %s1 = inlined_call_operand.hbm [shape: f32[1,2], index: 1, kind: output, shape index: {}]
  %s2 = sld [smem:[#allocation0]]
  $region26: #{tpu_custom_call.1} parent=0
    _
  %s4 = ssub.s32 1, %s2
  %s5 = scalar_select 0, %s4, %s2
  $region1: #{tpu_custom_call.1} parent=0
    #allocation4 [shape = 'u8[8192]{0}', space=vmem, size = 0x2000, scoped, tag = 'input window, operand 0, single buffered']
    #allocation5 [shape = 's32[1]{0}', space=sflag, size = 0x4, scoped, tag = 'scoped memory for tpu_custom_call.1']
    #allocation6 [shape = 's32[1]{0}', space=sflag, size = 0x4, scoped, tag = 'scoped memory for tpu_custom_call.1']
    #allocation7 [shape = 'u8[512]{0}', space=smem, size = 0x200, scoped, tag = 'output window, operand 0, single buffered']
    %6 = vsyncpa [#allocation5], 0
    %7 = vsyncpa [#allocation6], 0
    // Predicated region
    $region2: #{tpu_custom_call.1} parent=1 // pred_check
      _
    $region3: #{tpu_custom_call.1} parent=1 // pred_check_branch
      %9 = sbr.rel (0) target = $region5
    $region4: #{tpu_custom_call.1} parent=1 // pred_region
      %s10 = sadd.s32 0, 0
      %s12 = ssub.s32 256, 256
      %13 = vsyncadd [#allocation5], %s12
      %s14 = smul.addr %s10, 2
      %s15 = smul.addr %s14, 128
      %s16 = scalar_lea.hbm %s0, %s15
      %s18 = sshll.u32 [#allocation4], 4
      %s19 = int_to_ptr.vmem [resolvable:$true] %s18
      %21 = dma.hbm_to_vmem [thread:$0]  %s16, 256, %s19, [#allocation5]
    $region5: #{tpu_custom_call.1} parent=1 // pred_fallthru
      _
    // Predicated region
    $region6: #{tpu_custom_call.1} parent=1 // pred_check
      _
    $region7: #{tpu_custom_call.1} parent=1 // pred_check_branch
      %23 = sbr.rel (0) target = $region9
    $region8: #{tpu_custom_call.1} parent=1 // pred_region
      %24 = dma.done [#allocation5], 256
    $region9: #{tpu_custom_call.1} parent=1 // pred_fallthru
      _
    %s25 = sadd.s32 0, 0
    %p26 = scmp.eq.s32.totalorder 0, 0
    // Predicated region
    $region10: #{tpu_custom_call.1} parent=1 // pred_check
      %p27 = pneg %p26
    $region11: #{tpu_custom_call.1} parent=1 // pred_check_branch
      %29 = sbr.rel (%p27) target = $region13
    $region12: #{tpu_custom_call.1} parent=1 // pred_region
      %30 = vst [vmem:[#allocation2] sm:$0xff] 0.0
      %31 = vst [vmem:[#allocation2 + $0x8] sm:$0xff] 0.0
      %32 = vst [vmem:[#allocation3] sm:$0xff] 0.0
      %33 = vst [vmem:[#allocation3 + $0x8] sm:$0xff] 0.0
    $region13: #{tpu_custom_call.1} parent=1 // pred_fallthru
      _
    %v34 = vld [vmem:[#allocation4] sm:$0xff]
    %v35 = vld [vmem:[#allocation4 + $0x8] sm:$0xff]
    %36 = vrot.lane.b32.xlu0 %v34, 112
    %v37 = vpop.permute.xlu0 %36
    %38 = vrot.lane.b32.xlu0 %v35, 112
    %v39 = vpop.permute.xlu0 %38
    %v40 = vlaneseq
    %v41 = vand.u32 %v40, 127
    %vm42 = vcmp.lt.s32.totalorder %v41, 112
    %v43 = vsel %vm42, %v37, %v39
    %v44 = vsel %vm42, %v39, %v37
    %v45 = vsub.f32 %v43, %v34
    %v46 = vsub.f32 %v44, %v35
    %v47 = vand.u32 2147483647, %v45
    %v48 = vand.u32 2147483647, %v46
    %v49 = vld [vmem:[#allocation2] sm:$0xff]
    %v50 = vld [vmem:[#allocation2 + $0x8] sm:$0xff]
    %v51 = vadd.f32 %v49, %v47
    %v52 = vadd.f32 %v50, %v48
    %53 = vst [vmem:[#allocation2] sm:$0xff] %v51
    %54 = vst [vmem:[#allocation2 + $0x8] sm:$0xff] %v52
    %55 = vrot.lane.b32.xlu0 %v34, 127
    %v56 = vpop.permute.xlu0 %55
    %57 = vrot.lane.b32.xlu0 %v35, 127
    %v58 = vpop.permute.xlu0 %57
    %vm59 = vcmp.lt.s32.totalorder %v41, 127
    %v60 = vsel %vm59, %v56, %v58
    %v61 = vsel %vm59, %v58, %v56
    %v62 = vsub.f32 %v60, %v34
    %v63 = vsub.f32 %v61, %v35
    %v64 = vand.u32 2147483647, %v62
    %v65 = vand.u32 2147483647, %v63
    %v66 = vld [vmem:[#allocation3] sm:$0xff]
    %v67 = vld [vmem:[#allocation3 + $0x8] sm:$0xff]
    %v68 = vadd.f32 %v66, %v64
    %v69 = vadd.f32 %v67, %v65
    %70 = vst [vmem:[#allocation3] sm:$0xff] %v68
    %71 = vst [vmem:[#allocation3 + $0x8] sm:$0xff] %v69
    // Predicated region
    $region14: #{tpu_custom_call.1} parent=1 // pred_check
      %p72 = pneg %p26
    $region15: #{tpu_custom_call.1} parent=1 // pred_check_branch
      %74 = sbr.rel (%p72) target = $region17
    $region16: #{tpu_custom_call.1} parent=1 // pred_region
      %v75 = vadd.s32 %v41, 128
      %vm76 = vcmp.lt.s32.totalorder %v41, 240
      %vm77 = vcmp.lt.s32.totalorder %v75, 240
      %v78 = vsel %vm76, 1, 0
      %v79 = vsel %vm77, 1, 0
      %v80 = vcvt.s32.f32 %v78
      %v81 = vcvt.s32.f32 %v79
      %v82 = vld [vmem:[#allocation2] sm:$0xff]
      %v83 = vld [vmem:[#allocation2 + $0x8] sm:$0xff]
      %v84 = vmul.f32 %v82, %v80
      %v85 = vmul.f32 %v83, %v81
      %v86 = vadd.f32 %v84, %v85
      %87 = vadd.xlane.f32.xlu0 %v86
      %v88 = vpop.xlane.xlu0 %87
      %v89 = vrot.slane %v88, 4
      %v90 = vadd.f32 %v88, %v89
      %v91 = vrot.slane %v90, 2
      %v92 = vadd.f32 %v90, %v91
      %v93 = vrot.slane %v92, 1
      %v94 = vadd.f32 %v92, %v93
      %s95 = vtos %v94
      %s96 = scalar_lea.smem [#allocation7], 0
      %97 = sst [smem:[%s96]] %s95
      %vm98 = vcmp.lt.s32.totalorder %v41, 0
      %v99 = vsub.s32 0, %v41
      %v100 = vsel %vm98, %v99, %v41
      %v101 = vshrl.u32 %v100, 4
      %v102 = vand.u32 %v100, 15
      %v103 = vsub.s32 0, %v102
      %v104 = vsel %vm98, %v103, %v102
      %vm105 = vcmp.lt.s32.totalorder %v75, 0
      %v106 = vsub.s32 0, %v75
      %v107 = vsel %vm105, %v106, %v75
      %v108 = vshrl.u32 %v107, 4
      %v109 = vand.u32 %v107, 15
      %v110 = vsub.s32 0, %v109
      %v111 = vsel %vm105, %v110, %v109
      %vm112 = vcmp.ne.s32.totalorder %v104, 0
      %vm113 = vcmp.ne.s32.totalorder %v111, 0
      %vm114 = vcmp.lt.s32.totalorder %v104, 0
      %vm115 = vcmp.lt.s32.totalorder %v111, 0
      %vm116 = vmand %vm114, %vm112
      %vm117 = vmand %vm115, %vm113
      %v118 = vadd.s32 %v104, 16
      %v119 = vadd.s32 %v111, 16
      %v120 = vsel %vm116, %v118, %v104
      %v121 = vsel %vm117, %v119, %v111
      %vm122 = vcmp.ne.s32.totalorder %v120, 15
      %vm123 = vcmp.ne.s32.totalorder %v121, 15
      %v124 = vsel %vm122, 1, 0
      %v125 = vsel %vm123, 1, 0
      %v126 = vcvt.s32.f32 %v124
      %v127 = vcvt.s32.f32 %v125
      %v128 = vld [vmem:[#allocation3] sm:$0xff]
      %v129 = vld [vmem:[#allocation3 + $0x8] sm:$0xff]
      %v130 = vmul.f32 %v128, %v126
      %v131 = vmul.f32 %v129, %v127
      %v132 = vadd.f32 %v130, %v131
      %133 = vadd.xlane.f32.xlu0 %v132
      %v134 = vpop.xlane.xlu0 %133
      %v135 = vrot.slane %v134, 4
      %v136 = vadd.f32 %v134, %v135
      %v137 = vrot.slane %v136, 2
      %v138 = vadd.f32 %v136, %v137
      %v139 = vrot.slane %v138, 1
      %v140 = vadd.f32 %v138, %v139
      %s141 = vtos %v140
      %s142 = scalar_lea.smem [#allocation7], 1
      %143 = sst [smem:[%s142]] %s141
    $region17: #{tpu_custom_call.1} parent=1 // pred_fallthru
      _
    // Predicated region
    $region18: #{tpu_custom_call.1} parent=1 // pred_check
      _
    $region19: #{tpu_custom_call.1} parent=1 // pred_check_branch
      %145 = sbr.rel (0) target = $region21
    $region20: #{tpu_custom_call.1} parent=1 // pred_region
      %s147 = ssub.s32 16, 16
      %148 = vsyncadd [#allocation6], %s147
      %151 = dma.smem_to_hbm [#allocation7], 16, %s1, [#allocation6]
    $region21: #{tpu_custom_call.1} parent=1 // pred_fallthru
      _
    // Predicated region
    $region22: #{tpu_custom_call.1} parent=1 // pred_check
      _
    $region23: #{tpu_custom_call.1} parent=1 // pred_check_branch
      %153 = sbr.rel (0) target = $region25
    $region24: #{tpu_custom_call.1} parent=1 // pred_region
      %154 = dma.done [#allocation6], 16
    $region25: #{tpu_custom_call.1} parent=1 // pred_fallthru
      _
    %155 = sfence
    %156 = vsyncpa [#allocation5], 1
    %157 = vsyncpa [#allocation6], 1

</llo_original>
